<compile_context>
chip_gen: v7x
topology: tpu7x:2x2x1
jax: 0.10.0
libtpu: 0.0.40
codegen_flags: <defaults>
</compile_context>

<pallas_src>
import jax
import jax.numpy as jnp
from jax.experimental import pallas as pl
from jax.experimental.pallas import tpu as pltpu

SMOOTH = 1.0   # module default smooth=1
P_EXP = 2      # module default p=2 (kernel computes x*x, exactly x**2)

_LANES = 128
_SUBLANES = 8
_INPUT_VMEM_BUDGET = 8 * 1024 * 1024    # bytes for the double-buffered inputs
_VMEM_LIMIT = 32 * 1024 * 1024          # safe on v5e/v6e (128 MiB) and v7x (64 MiB)


def _dice_stats_kernel(p_ref, t_ref, xy_ref, pw_ref, ones_ref, nonz_ref):
    """Per-row partial reductions, lane-wide.

    p_ref/t_ref: (N, TILE_R, 128) slice of the zero-padded feature axis.
    Outputs: (N, 128) lane-wide accumulators (one block per parallel chunk).
    Only the chunk/sublane axis is reduced here; the 128 -> 1 lane reduction
    happens once in JAX glue.
    """
    @pl.when(pl.program_id(1) == 0)
    def _():
        xy_ref[...] = jnp.zeros_like(xy_ref)
        pw_ref[...] = jnp.zeros_like(pw_ref)
        ones_ref[...] = jnp.zeros_like(ones_ref)
        nonz_ref[...] = jnp.zeros_like(nonz_ref)

    p = p_ref[...].astype(jnp.float32)
    t = t_ref[...].astype(jnp.float32)

    xy_ref[...] += jnp.sum(p * t, axis=1)
    pw_ref[...] += jnp.sum(p * p + t * t, axis=1)                      # p == 2
    ones_ref[...] += jnp.sum((t == 1.0).astype(jnp.float32), axis=1)
    # Count non-zeros (zeros = D - nonzeros in glue) so zero padding is safe.
    nonz_ref[...] += jnp.sum((t != 0.0).astype(jnp.float32), axis=1)


def _round_up(x, m):
    return (x + m - 1) // m * m


def dice_stats(predict3d, target3d, tile_r):
    n, r_total, lanes = predict3d.shape
    g = r_total // tile_r
    num_par = 2 if (g >= 2 and g % 2 == 0) else 1   # let v7x's 2nd TC help
    steps = g // num_par

    in_spec = pl.BlockSpec((n, tile_r, lanes), lambda c, k: (0, c * steps + k, 0))
    out_spec = pl.BlockSpec((None, n, lanes), lambda c, k: (c, 0, 0))
    out1 = jax.ShapeDtypeStruct((num_par, n, lanes), jnp.float32)

    return pl.pallas_call(
        _dice_stats_kernel,
        out_shape=(out1, out1, out1, out1),
        grid_spec=pltpu.PrefetchScalarGridSpec(
            num_scalar_prefetch=0,
            grid=(num_par, steps),
            in_specs=[in_spec, in_spec],
            out_specs=(out_spec, out_spec, out_spec, out_spec),
        ),
        compiler_params=pltpu.CompilerParams(
            dimension_semantics=("parallel", "arbitrary"),
            vmem_limit_bytes=_VMEM_LIMIT),
    )(predict3d, target3d)


def binary_dice_loss(predict, target, key, smooth=SMOOTH, reduction="mean",
                     max_tile_rows=None):
    assert predict.shape[0] == target.shape[0], \
        "predict & target batch size don't match"
    n = predict.shape[0]
    predict2d = jnp.reshape(predict, (n, -1))   # keep original dtype (bf16 ok)
    target2d = jnp.reshape(target, (n, -1))
    d = predict2d.shape[1]

    # ---- pick tile from the double-buffered VMEM budget, fold to (N,R,128) --
    bytes_per_elem = predict2d.dtype.itemsize + target2d.dtype.itemsize
    per_row128 = n * _LANES * bytes_per_elem * 2          # x2 double buffering
    if max_tile_rows is None:
        max_tile_rows = max(
            _SUBLANES,
            (_INPUT_VMEM_BUDGET // per_row128) // _SUBLANES * _SUBLANES)
    r = _round_up(pl.cdiv(d, _LANES), _SUBLANES)
    tile_r = min(max_tile_rows, r)
    r_total = _round_up(r, tile_r)
    d_pad = r_total * _LANES

    predict3d = jnp.pad(predict2d, ((0, 0), (0, d_pad - d))).reshape(n, r_total, _LANES)
    target3d = jnp.pad(target2d, ((0, 0), (0, d_pad - d))).reshape(n, r_total, _LANES)

    xy_p, pw_p, ones_p, nonz_p = dice_stats(predict3d, target3d, tile_r)
    sum_xy = jnp.sum(xy_p, axis=(0, 2))                   # (N,)
    sum_pw = jnp.sum(pw_p, axis=(0, 2))
    row_ones = jnp.sum(ones_p, axis=(0, 2))
    row_zeros = d - jnp.sum(nonz_p, axis=(0, 2))          # exact count(t == 0)

    num = 2.0 * sum_xy + smooth
    den = sum_pw + smooth
    loss = 1.0 - num / den                                 # (N,)

    # mask[i] = 1 for rows containing any target element == 1
    mask = (row_ones > 0).astype(jnp.float32)

    total_ones = jnp.sum(row_ones)
    total_zeros = jnp.sum(row_zeros)
    tot = jnp.minimum(3.0 * total_ones, total_zeros)       # traced, no host sync

    # Random negative sampling (rows of `tot` uniformly-drawn zero elements).
    # A row is marked iff its smallest random key over zero elements ranks
    # below `tot` among all zero-element keys -- exactly the distribution of
    # torch.randperm(num_zeros)[:tot], with no sort / dynamic shape / recompile.
    # TODO(synk): torch.randperm's RNG stream cannot be bit-matched; the same
    # distribution is reproduced with jax.random.
    keys = jax.random.uniform(key, (n, d), dtype=jnp.float32)
    keys = jnp.where(target2d == 0, keys, jnp.inf)
    row_min = jnp.min(keys, axis=1)                                   # (N,)
    count_less = jnp.sum(keys.reshape(1, -1) < row_min[:, None],
                         axis=1).astype(jnp.float32)                  # global rank
    mask = jnp.maximum(mask, (count_less < tot).astype(jnp.float32))

    if reduction == "mean":
        return (loss * mask).sum() / (mask.sum() + 1e-10)
    # The reference module only implements 'mean' (other reductions fall through).
    return None


if __name__ == "__main__":
    root = jax.random.PRNGKey(0)
    k1, k2, k3 = jax.random.split(root, 3)
    shape = (2, 4, 16, 16)   # NCHW, flattened to [2, 1024] inside the wrapper
    predict = jax.random.uniform(k1, shape, dtype=jnp.float32)
    target = (jax.random.uniform(k2, shape) < 0.1).astype(jnp.float32)

    loss = jax.jit(binary_dice_loss)(predict, target, k3)
    jax.block_until_ready(loss)
    print("KERNEL_OK")
</pallas_src>

<mosaic_0001>
module attributes {stable_mosaic.version = 11 : i64} {
  func.func @_dice_stats_kernel(%arg0: i32, %arg1: i32, %arg2: memref<2x8x128xf32, #tpu.memory_space<vmem>>, %arg3: memref<2x8x128xf32, #tpu.memory_space<vmem>>, %arg4: memref<1x2x128xf32, #tpu.memory_space<vmem>>, %arg5: memref<1x2x128xf32, #tpu.memory_space<vmem>>, %arg6: memref<1x2x128xf32, #tpu.memory_space<vmem>>, %arg7: memref<1x2x128xf32, #tpu.memory_space<vmem>>) attributes {dimension_semantics = [#tpu.dimension_semantics<parallel>, #tpu.dimension_semantics<arbitrary>], iteration_bounds = array<i64: 1, 1>, scalar_prefetch = 0 : i64, scratch_operands = 0 : i64, tpu.core_type = #tpu.core_type<tc>, window_params = [{transform_indices = @transform_0, window_bounds = array<i64: 2, 8, 128>}, {transform_indices = @transform_1, window_bounds = array<i64: 2, 8, 128>}, {transform_indices = @transform_2, window_bounds = array<i64: 1, 2, 128>}, {transform_indices = @transform_3, window_bounds = array<i64: 1, 2, 128>}, {transform_indices = @transform_4, window_bounds = array<i64: 1, 2, 128>}, {transform_indices = @transform_5, window_bounds = array<i64: 1, 2, 128>}]} {
    %c0_i32 = arith.constant 0 : i32
    %0 = arith.cmpi eq, %arg1, %c0_i32 : i32
    %1 = arith.extui %0 : i1 to i32
    %c0_i32_0 = arith.constant 0 : i32
    %2 = arith.cmpi ne, %1, %c0_i32_0 : i32
    scf.if %2 {
      %cst_35 = arith.constant 0.000000e+00 : f32
      %45 = vector.broadcast %cst_35 : f32 to vector<2x128xf32>
      %c0_36 = arith.constant 0 : index
      %c0_37 = arith.constant 0 : index
      %c0_38 = arith.constant 0 : index
      %46 = vector.load %arg4[%c0_36, %c0_37, %c0_38] : memref<1x2x128xf32, #tpu.memory_space<vmem>>, vector<1x2x128xf32>
      %47 = vector.shape_cast %46 : vector<1x2x128xf32> to vector<2x128xf32>
      %48 = vector.shape_cast %45 : vector<2x128xf32> to vector<1x2x128xf32>
      tpu.vector_store %arg4[%c0_36, %c0_37, %c0_38], %48 {strides = array<i32>} : memref<1x2x128xf32, #tpu.memory_space<vmem>>, vector<1x2x128xf32>,
      %cst_39 = arith.constant 0.000000e+00 : f32
      %49 = vector.broadcast %cst_39 : f32 to vector<2x128xf32>
      %c0_40 = arith.constant 0 : index
      %c0_41 = arith.constant 0 : index
      %c0_42 = arith.constant 0 : index
      %50 = vector.load %arg5[%c0_40, %c0_41, %c0_42] : memref<1x2x128xf32, #tpu.memory_space<vmem>>, vector<1x2x128xf32>
      %51 = vector.shape_cast %50 : vector<1x2x128xf32> to vector<2x128xf32>
      %52 = vector.shape_cast %49 : vector<2x128xf32> to vector<1x2x128xf32>
      tpu.vector_store %arg5[%c0_40, %c0_41, %c0_42], %52 {strides = array<i32>} : memref<1x2x128xf32, #tpu.memory_space<vmem>>, vector<1x2x128xf32>,
      %cst_43 = arith.constant 0.000000e+00 : f32
      %53 = vector.broadcast %cst_43 : f32 to vector<2x128xf32>
      %c0_44 = arith.constant 0 : index
      %c0_45 = arith.constant 0 : index
      %c0_46 = arith.constant 0 : index
      %54 = vector.load %arg6[%c0_44, %c0_45, %c0_46] : memref<1x2x128xf32, #tpu.memory_space<vmem>>, vector<1x2x128xf32>
      %55 = vector.shape_cast %54 : vector<1x2x128xf32> to vector<2x128xf32>
      %56 = vector.shape_cast %53 : vector<2x128xf32> to vector<1x2x128xf32>
      tpu.vector_store %arg6[%c0_44, %c0_45, %c0_46], %56 {strides = array<i32>} : memref<1x2x128xf32, #tpu.memory_space<vmem>>, vector<1x2x128xf32>,
      %cst_47 = arith.constant 0.000000e+00 : f32
      %57 = vector.broadcast %cst_47 : f32 to vector<2x128xf32>
      %c0_48 = arith.constant 0 : index
      %c0_49 = arith.constant 0 : index
      %c0_50 = arith.constant 0 : index
      %58 = vector.load %arg7[%c0_48, %c0_49, %c0_50] : memref<1x2x128xf32, #tpu.memory_space<vmem>>, vector<1x2x128xf32>
      %59 = vector.shape_cast %58 : vector<1x2x128xf32> to vector<2x128xf32>
      %60 = vector.shape_cast %57 : vector<2x128xf32> to vector<1x2x128xf32>
      tpu.vector_store %arg7[%c0_48, %c0_49, %c0_50], %60 {strides = array<i32>} : memref<1x2x128xf32, #tpu.memory_space<vmem>>, vector<1x2x128xf32>,
    } else {
    }
    %c0 = arith.constant 0 : index
    %c0_1 = arith.constant 0 : index
    %c0_2 = arith.constant 0 : index
    %3 = vector.load %arg2[%c0, %c0_1, %c0_2] : memref<2x8x128xf32, #tpu.memory_space<vmem>>, vector<2x8x128xf32>
    %c0_3 = arith.constant 0 : index
    %c0_4 = arith.constant 0 : index
    %c0_5 = arith.constant 0 : index
    %4 = vector.load %arg3[%c0_3, %c0_4, %c0_5] : memref<2x8x128xf32, #tpu.memory_space<vmem>>, vector<2x8x128xf32>
    %c0_6 = arith.constant 0 : index
    %c0_7 = arith.constant 0 : index
    %c0_8 = arith.constant 0 : index
    %5 = vector.load %arg4[%c0_6, %c0_7, %c0_8] : memref<1x2x128xf32, #tpu.memory_space<vmem>>, vector<1x2x128xf32>
    %6 = vector.shape_cast %5 : vector<1x2x128xf32> to vector<2x128xf32>
    %7 = arith.mulf %3, %4 : vector<2x8x128xf32>
    %cst = arith.constant dense<0.000000e+00> : vector<2x128xf32>
    %8 = vector.multi_reduction <add>, %7, %cst [1] : vector<2x8x128xf32> to vector<2x128xf32>
    %9 = arith.addf %6, %8 : vector<2x128xf32>
    %c0_9 = arith.constant 0 : index
    %c0_10 = arith.constant 0 : index
    %c0_11 = arith.constant 0 : index
    %10 = vector.load %arg4[%c0_9, %c0_10, %c0_11] : memref<1x2x128xf32, #tpu.memory_space<vmem>>, vector<1x2x128xf32>
    %11 = vector.shape_cast %10 : vector<1x2x128xf32> to vector<2x128xf32>
    %12 = vector.shape_cast %9 : vector<2x128xf32> to vector<1x2x128xf32>
    tpu.vector_store %arg4[%c0_9, %c0_10, %c0_11], %12 {strides = array<i32>} : memref<1x2x128xf32, #tpu.memory_space<vmem>>, vector<1x2x128xf32>,
    %c0_12 = arith.constant 0 : index
    %c0_13 = arith.constant 0 : index
    %c0_14 = arith.constant 0 : index
    %13 = vector.load %arg5[%c0_12, %c0_13, %c0_14] : memref<1x2x128xf32, #tpu.memory_space<vmem>>, vector<1x2x128xf32>
    %14 = vector.shape_cast %13 : vector<1x2x128xf32> to vector<2x128xf32>
    %15 = arith.mulf %3, %3 : vector<2x8x128xf32>
    %16 = arith.mulf %4, %4 : vector<2x8x128xf32>
    %17 = arith.addf %15, %16 : vector<2x8x128xf32>
    %cst_15 = arith.constant dense<0.000000e+00> : vector<2x128xf32>
    %18 = vector.multi_reduction <add>, %17, %cst_15 [1] : vector<2x8x128xf32> to vector<2x128xf32>
    %19 = arith.addf %14, %18 : vector<2x128xf32>
    %c0_16 = arith.constant 0 : index
    %c0_17 = arith.constant 0 : index
    %c0_18 = arith.constant 0 : index
    %20 = vector.load %arg5[%c0_16, %c0_17, %c0_18] : memref<1x2x128xf32, #tpu.memory_space<vmem>>, vector<1x2x128xf32>
    %21 = vector.shape_cast %20 : vector<1x2x128xf32> to vector<2x128xf32>
    %22 = vector.shape_cast %19 : vector<2x128xf32> to vector<1x2x128xf32>
    tpu.vector_store %arg5[%c0_16, %c0_17, %c0_18], %22 {strides = array<i32>} : memref<1x2x128xf32, #tpu.memory_space<vmem>>, vector<1x2x128xf32>,
    %c0_19 = arith.constant 0 : index
    %c0_20 = arith.constant 0 : index
    %c0_21 = arith.constant 0 : index
    %23 = vector.load %arg6[%c0_19, %c0_20, %c0_21] : memref<1x2x128xf32, #tpu.memory_space<vmem>>, vector<1x2x128xf32>
    %24 = vector.shape_cast %23 : vector<1x2x128xf32> to vector<2x128xf32>
    %cst_22 = arith.constant 1.000000e+00 : f32
    %25 = vector.broadcast %cst_22 : f32 to vector<2x8x128xf32>
    %26 = arith.cmpf oeq, %4, %25 : vector<2x8x128xf32>
    %27 = arith.extui %26 : vector<2x8x128xi1> to vector<2x8x128xi32>
    %28 = arith.sitofp %27 : vector<2x8x128xi32> to vector<2x8x128xf32>
    %cst_23 = arith.constant dense<0.000000e+00> : vector<2x128xf32>
    %29 = vector.multi_reduction <add>, %28, %cst_23 [1] : vector<2x8x128xf32> to vector<2x128xf32>
    %30 = arith.addf %24, %29 : vector<2x128xf32>
    %c0_24 = arith.constant 0 : index
    %c0_25 = arith.constant 0 : index
    %c0_26 = arith.constant 0 : index
    %31 = vector.load %arg6[%c0_24, %c0_25, %c0_26] : memref<1x2x128xf32, #tpu.memory_space<vmem>>, vector<1x2x128xf32>
    %32 = vector.shape_cast %31 : vector<1x2x128xf32> to vector<2x128xf32>
    %33 = vector.shape_cast %30 : vector<2x128xf32> to vector<1x2x128xf32>
    tpu.vector_store %arg6[%c0_24, %c0_25, %c0_26], %33 {strides = array<i32>} : memref<1x2x128xf32, #tpu.memory_space<vmem>>, vector<1x2x128xf32>,
    %c0_27 = arith.constant 0 : index
    %c0_28 = arith.constant 0 : index
    %c0_29 = arith.constant 0 : index
    %34 = vector.load %arg7[%c0_27, %c0_28, %c0_29] : memref<1x2x128xf32, #tpu.memory_space<vmem>>, vector<1x2x128xf32>
    %35 = vector.shape_cast %34 : vector<1x2x128xf32> to vector<2x128xf32>
    %cst_30 = arith.constant 0.000000e+00 : f32
    %36 = vector.broadcast %cst_30 : f32 to vector<2x8x128xf32>
    %37 = arith.cmpf one, %4, %36 : vector<2x8x128xf32>
    %38 = arith.extui %37 : vector<2x8x128xi1> to vector<2x8x128xi32>
    %39 = arith.sitofp %38 : vector<2x8x128xi32> to vector<2x8x128xf32>
    %cst_31 = arith.constant dense<0.000000e+00> : vector<2x128xf32>
    %40 = vector.multi_reduction <add>, %39, %cst_31 [1] : vector<2x8x128xf32> to vector<2x128xf32>
    %41 = arith.addf %35, %40 : vector<2x128xf32>
    %c0_32 = arith.constant 0 : index
    %c0_33 = arith.constant 0 : index
    %c0_34 = arith.constant 0 : index
    %42 = vector.load %arg7[%c0_32, %c0_33, %c0_34] : memref<1x2x128xf32, #tpu.memory_space<vmem>>, vector<1x2x128xf32>
    %43 = vector.shape_cast %42 : vector<1x2x128xf32> to vector<2x128xf32>
    %44 = vector.shape_cast %41 : vector<2x128xf32> to vector<1x2x128xf32>
    tpu.vector_store %arg7[%c0_32, %c0_33, %c0_34], %44 {strides = array<i32>} : memref<1x2x128xf32, #tpu.memory_space<vmem>>, vector<1x2x128xf32>,
    return
  }
  func.func @transform_0(%arg0: i32, %arg1: i32) -> (i32, i32, i32) {
    %c1_i32 = arith.constant 1 : i32
    %0 = arith.muli %arg0, %c1_i32 : i32
    %1 = arith.addi %0, %arg1 : i32
    %c0_i32 = arith.constant 0 : i32
    %c0_i32_0 = arith.constant 0 : i32
    %c0_i32_1 = arith.constant 0 : i32
    return %c0_i32, %1, %c0_i32_0 : i32, i32, i32
  }
  func.func @transform_1(%arg0: i32, %arg1: i32) -> (i32, i32, i32) {
    %c1_i32 = arith.constant 1 : i32
    %0 = arith.muli %arg0, %c1_i32 : i32
    %1 = arith.addi %0, %arg1 : i32
    %c0_i32 = arith.constant 0 : i32
    %c0_i32_0 = arith.constant 0 : i32
    %c0_i32_1 = arith.constant 0 : i32
    return %c0_i32, %1, %c0_i32_0 : i32, i32, i32
  }
  func.func @transform_2(%arg0: i32, %arg1: i32) -> (i32, i32, i32) {
    %c0_i32 = arith.constant 0 : i32
    %c0_i32_0 = arith.constant 0 : i32
    %c0_i32_1 = arith.constant 0 : i32
    return %arg0, %c0_i32, %c0_i32_0 : i32, i32, i32
  }
  func.func @transform_3(%arg0: i32, %arg1: i32) -> (i32, i32, i32) {
    %c0_i32 = arith.constant 0 : i32
    %c0_i32_0 = arith.constant 0 : i32
    %c0_i32_1 = arith.constant 0 : i32
    return %arg0, %c0_i32, %c0_i32_0 : i32, i32, i32
  }
  func.func @transform_4(%arg0: i32, %arg1: i32) -> (i32, i32, i32) {
    %c0_i32 = arith.constant 0 : i32
    %c0_i32_0 = arith.constant 0 : i32
    %c0_i32_1 = arith.constant 0 : i32
    return %arg0, %c0_i32, %c0_i32_0 : i32, i32, i32
  }
  func.func @transform_5(%arg0: i32, %arg1: i32) -> (i32, i32, i32) {
    %c0_i32 = arith.constant 0 : i32
    %c0_i32_0 = arith.constant 0 : i32
    %c0_i32_1 = arith.constant 0 : i32
    return %arg0, %c0_i32, %c0_i32_0 : i32, i32, i32
  }
}

</mosaic_0001>

<llo_original>
// kernel: binary_dice_loss.1
$region0: #{binary_dice_loss.1}
  #allocation0 [shape = 'u32[]', space=smem, size = 0x4, offset = 0x4, fixed_abs, tag = 'smem constant byte address 0x4 - core index']
  #allocation1 [shape = 'u32[144,128]{1,0:T(1,128)}', space=vmem, size = 0x12000, scoped, tag = 'internal scratch']
  %s0 = inlined_call_operand.vmem [shape: f32[2,8,128], index: 0, kind: input, shape index: {}]
  %s1 = inlined_call_operand.vmem [shape: f32[2,8,128], index: 1, kind: input, shape index: {}]
  %s2 = inlined_call_operand.vmem [shape: f32[1,2,128], index: 2, kind: output, shape index: {0}]
  %s3 = inlined_call_operand.vmem [shape: f32[1,2,128], index: 3, kind: output, shape index: {1}]
  %s4 = inlined_call_operand.vmem [shape: f32[1,2,128], index: 4, kind: output, shape index: {2}]
  %s5 = inlined_call_operand.vmem [shape: f32[1,2,128], index: 5, kind: output, shape index: {3}]
  %6 = xla_tuple %s2, %s3, %s4, %s5
  %s7 = sld [smem:[#allocation0]]
  $region46: #{binary_dice_loss.1} parent=0
    _
  %s9 = ssub.s32 1, %s7
  %s10 = scalar_select 0, %s9, %s7
  // Predicated region
  $region2: #{binary_dice_loss.1} parent=0 // pred_check
    _
  $region3: #{binary_dice_loss.1} parent=0 // pred_check_branch
    %12 = sbr.rel (0) target = $region5
  $region4: #{binary_dice_loss.1} parent=0 // pred_region
    %s13 = sadd.s32 0, 0
    %p14 = scmp.lt.s32.totalorder %s13, 0
    %s15 = scalar_select %p14, %s13, 0
    %s16 = smul.addr %s15, 8
    %s17 = scalar_lea.vmem %s0, %s16
    %s18 = sadd.s32 0, 0
  $region5: #{binary_dice_loss.1} parent=0 // pred_fallthru
    _
  // Predicated region
  $region6: #{binary_dice_loss.1} parent=0 // pred_check
    _
  $region7: #{binary_dice_loss.1} parent=0 // pred_check_branch
    %20 = sbr.rel (0) target = $region9
  $region8: #{binary_dice_loss.1} parent=0 // pred_region
    %s21 = sadd.s32 0, 0
    %p22 = scmp.lt.s32.totalorder %s21, 0
    %s23 = scalar_select %p22, %s21, 0
    %s24 = smul.addr %s23, 8
    %s25 = scalar_lea.vmem %s1, %s24
    %s26 = sadd.s32 0, 0
  $region9: #{binary_dice_loss.1} parent=0 // pred_fallthru
    _
  %s27 = sadd.s32 0, 0
  %p28 = scmp.lt.s32.totalorder %s27, 0
  %s29 = scalar_select %p28, %s27, 0
  %s30 = smul.addr %s29, 8
  %s31 = scalar_lea.vmem %s0, %s30
  %s32 = sadd.s32 0, 0
  %p33 = scmp.lt.s32.totalorder %s32, 0
  %s34 = scalar_select %p33, %s32, 0
  %s35 = smul.addr %s34, 8
  %s36 = scalar_lea.vmem %s1, %s35
  %s37 = sadd.s32 0, 0
  %p38 = scmp.lt.s32.totalorder %s37, 0
  %s39 = scalar_select %p38, %s37, 0
  %s40 = smul.addr %s39, 8
  %s41 = scalar_lea.vmem %s0, %s40
  %s42 = sadd.s32 0, 0
  %s43 = sadd.s32 0, 0
  %p44 = scmp.lt.s32.totalorder %s43, 0
  %s45 = scalar_select %p44, %s43, 0
  %s46 = smul.addr %s45, 8
  %s47 = scalar_lea.vmem %s1, %s46
  %s48 = sadd.s32 0, 0
  %p49 = scmp.eq.s32.totalorder 0, 0
  // Predicated region
  $region10: #{binary_dice_loss.1} parent=0 // pred_check
    %p50 = pneg %p49
  $region11: #{binary_dice_loss.1} parent=0 // pred_check_branch
    %52 = sbr.rel (%p50) target = $region13
  $region12: #{binary_dice_loss.1} parent=0 // pred_region
    %53 = vst [vmem:[%s2] sm:$0x3] 0.0
    %54 = vst [vmem:[%s3] sm:$0x3] 0.0
    %55 = vst [vmem:[%s4] sm:$0x3] 0.0
    %56 = vst [vmem:[%s5] sm:$0x3] 0.0
  $region13: #{binary_dice_loss.1} parent=0 // pred_fallthru
    _
  %v57 = vld [vmem:[%s41] sm:$0xff]
  %v58 = vld [vmem:[%s41 + $0x8] sm:$0xff]
  %v59 = vld [vmem:[%s47] sm:$0xff]
  %v60 = vld [vmem:[%s47 + $0x8] sm:$0xff]
  %v61 = vld [vmem:[%s2] sm:$0x3]
  %v62 = vmul.f32 %v57, %v59
  %v63 = vmul.f32 %v58, %v60
  %v64 = vrot.slane %v62, 4
  %v65 = vadd.f32 %v62, %v64
  %v66 = vrot.slane %v65, 2
  %v67 = vadd.f32 %v65, %v66
  %v68 = vrot.slane %v67, 1
  %v69 = vadd.f32 %v67, %v68
  %v70 = vrot.slane %v63, 4
  %v71 = vadd.f32 %v63, %v70
  %v72 = vrot.slane %v71, 2
  %v73 = vadd.f32 %v71, %v72
  %v74 = vrot.slane %v73, 1
  %v75 = vadd.f32 %v73, %v74
  %vm78 = vcmask 1041409
  %v79 = vsel %vm78, %v75, %v69
  %v81 = vadd.f32 %v61, %v79
  %82 = vst [vmem:[%s2] sm:$0x3] %v81
  %v83 = vld [vmem:[%s3] sm:$0x3]
  %v84 = vmul.f32 %v57, %v57
  %v85 = vmul.f32 %v58, %v58
  %v86 = vmul.f32 %v59, %v59
  %v87 = vmul.f32 %v60, %v60
  %v88 = vadd.f32 %v84, %v86
  %v89 = vadd.f32 %v85, %v87
  %v90 = vrot.slane %v88, 4
  %v91 = vadd.f32 %v88, %v90
  %v92 = vrot.slane %v91, 2
  %v93 = vadd.f32 %v91, %v92
  %v94 = vrot.slane %v93, 1
  %v95 = vadd.f32 %v93, %v94
  %v96 = vrot.slane %v89, 4
  %v97 = vadd.f32 %v89, %v96
  %v98 = vrot.slane %v97, 2
  %v99 = vadd.f32 %v97, %v98
  %v100 = vrot.slane %v99, 1
  %v101 = vadd.f32 %v99, %v100
  %v104 = vsel %vm78, %v101, %v95
  %v106 = vadd.f32 %v83, %v104
  %107 = vst [vmem:[%s3] sm:$0x3] %v106
  %v108 = vld [vmem:[%s4] sm:$0x3]
  %vm109 = vcmp.eq.f32.partialorder %v59, 1.0
  %vm110 = vcmp.eq.f32.partialorder %v60, 1.0
  %v111 = vsel %vm109, 1, 0
  %v112 = vsel %vm110, 1, 0
  %v113 = vcvt.s32.f32 %v111
  %v114 = vcvt.s32.f32 %v112
  %v115 = vrot.slane %v113, 4
  %v116 = vadd.f32 %v113, %v115
  %v117 = vrot.slane %v116, 2
  %v118 = vadd.f32 %v116, %v117
  %v119 = vrot.slane %v118, 1
  %v120 = vadd.f32 %v118, %v119
  %v121 = vrot.slane %v114, 4
  %v122 = vadd.f32 %v114, %v121
  %v123 = vrot.slane %v122, 2
  %v124 = vadd.f32 %v122, %v123
  %v125 = vrot.slane %v124, 1
  %v126 = vadd.f32 %v124, %v125
  %v129 = vsel %vm78, %v126, %v120
  %v131 = vadd.f32 %v108, %v129
  %132 = vst [vmem:[%s4] sm:$0x3] %v131
  %v133 = vld [vmem:[%s5] sm:$0x3]
  %vm134 = vcmp.ne.f32.partialorder %v59, 0.0
  %vm135 = vcmp.ne.f32.partialorder %v60, 0.0
  %v136 = vsel %vm134, 1, 0
  %v137 = vsel %vm135, 1, 0
  %v138 = vcvt.s32.f32 %v136
  %v139 = vcvt.s32.f32 %v137
  %v140 = vrot.slane %v138, 4
  %v141 = vadd.f32 %v138, %v140
  %v142 = vrot.slane %v141, 2
  %v143 = vadd.f32 %v141, %v142
  %v144 = vrot.slane %v143, 1
  %v145 = vadd.f32 %v143, %v144
  %v146 = vrot.slane %v139, 4
  %v147 = vadd.f32 %v139, %v146
  %v148 = vrot.slane %v147, 2
  %v149 = vadd.f32 %v147, %v148
  %v150 = vrot.slane %v149, 1
  %v151 = vadd.f32 %v149, %v150
  %v154 = vsel %vm78, %v151, %v145
  %v156 = vadd.f32 %v133, %v154
  %157 = vst [vmem:[%s5] sm:$0x3] %v156
  // Predicated region
  $region14: #{binary_dice_loss.1} parent=0 // pred_check
    _
  $region15: #{binary_dice_loss.1} parent=0 // pred_check_branch
    %159 = sbr.rel (0) target = $region17
  $region16: #{binary_dice_loss.1} parent=0 // pred_region
    _
  $region17: #{binary_dice_loss.1} parent=0 // pred_fallthru
    _
  // Predicated region
  $region18: #{binary_dice_loss.1} parent=0 // pred_check
    _
  $region19: #{binary_dice_loss.1} parent=0 // pred_check_branch
    %161 = sbr.rel (0) target = $region21
  $region20: #{binary_dice_loss.1} parent=0 // pred_region
    _
  $region21: #{binary_dice_loss.1} parent=0 // pred_fallthru
    _
  // Predicated region
  $region22: #{binary_dice_loss.1} parent=0 // pred_check
    _
  $region23: #{binary_dice_loss.1} parent=0 // pred_check_branch
    %163 = sbr.rel (0) target = $region25
  $region24: #{binary_dice_loss.1} parent=0 // pred_region
    _
  $region25: #{binary_dice_loss.1} parent=0 // pred_fallthru
    _
  // Predicated region
  $region26: #{binary_dice_loss.1} parent=0 // pred_check
    _
  $region27: #{binary_dice_loss.1} parent=0 // pred_check_branch
    %165 = sbr.rel (0) target = $region29
  $region28: #{binary_dice_loss.1} parent=0 // pred_region
    _
  $region29: #{binary_dice_loss.1} parent=0 // pred_fallthru
    _
  // Predicated region
  $region30: #{binary_dice_loss.1} parent=0 // pred_check
    _
  $region31: #{binary_dice_loss.1} parent=0 // pred_check_branch
    %167 = sbr.rel (0) target = $region33
  $region32: #{binary_dice_loss.1} parent=0 // pred_region
    _
  $region33: #{binary_dice_loss.1} parent=0 // pred_fallthru
    _
  // Predicated region
  $region34: #{binary_dice_loss.1} parent=0 // pred_check
    _
  $region35: #{binary_dice_loss.1} parent=0 // pred_check_branch
    %169 = sbr.rel (0) target = $region37
  $region36: #{binary_dice_loss.1} parent=0 // pred_region
    _
  $region37: #{binary_dice_loss.1} parent=0 // pred_fallthru
    _
  // Predicated region
  $region38: #{binary_dice_loss.1} parent=0 // pred_check
    _
  $region39: #{binary_dice_loss.1} parent=0 // pred_check_branch
    %171 = sbr.rel (0) target = $region41
  $region40: #{binary_dice_loss.1} parent=0 // pred_region
    _
  $region41: #{binary_dice_loss.1} parent=0 // pred_fallthru
    _
  // Predicated region
  $region42: #{binary_dice_loss.1} parent=0 // pred_check
    _
  $region43: #{binary_dice_loss.1} parent=0 // pred_check_branch
    %173 = sbr.rel (0) target = $region45
  $region44: #{binary_dice_loss.1} parent=0 // pred_region
    _
  $region45: #{binary_dice_loss.1} parent=0 // pred_fallthru
    _

</llo_original>
